<compile_context>
chip_gen: v7x
topology: tpu7x:2x2x1
jax: 0.10.0
libtpu: 0.0.40
codegen_flags: <defaults>
</compile_context>

<pallas_src>
import functools
import math

import jax
import jax.numpy as jnp
from jax.experimental import pallas as pl
from jax.experimental.pallas import tpu as pltpu

ARCH = [(7, 64, 2, 3), 'M', (3, 192, 1, 1), 'M', (1, 128, 1, 0), (3, 256, 1, 1),
        (1, 256, 1, 0), (3, 512, 1, 1), 'M', [(1, 256, 1, 0), (3, 512, 1, 1), 4],
        (1, 512, 1, 0), (3, 1024, 1, 1), 'M', [(1, 512, 1, 0), (3, 1024, 1, 1), 2],
        (3, 1024, 1, 1), (3, 1024, 2, 1), (3, 1024, 1, 1), (3, 1024, 1, 1)]


def _round_up(x, m):
    return (x + m - 1) // m * m


def _pick_tile(total_padded, cap):
    """Largest multiple of 128 <= cap that divides total_padded (a multiple of 128)."""
    best = 128
    t = 128
    while t <= cap:
        if total_padded % t == 0:
            best = t
        t += 128
    return best


# ----------------------------- Pallas kernels ------------------------------

def _matmul_kernel(x_ref, w_ref, s_ref, b_ref, o_ref, acc_ref, *, act):
    k = pl.program_id(2)

    @pl.when(k == 0)
    def _():
        acc_ref[...] = jnp.zeros_like(acc_ref)

    # bf16 operands -> MXU-native matmul; accumulate in f32.
    acc_ref[...] += jnp.dot(x_ref[...], w_ref[...],
                            preferred_element_type=jnp.float32)

    @pl.when(k == pl.num_programs(2) - 1)
    def _():
        y = acc_ref[...] * s_ref[...] + b_ref[...]          # f32 epilogue
        if act == 'leaky':
            y = jnp.where(y > 0, y, 0.1 * y)
        elif act == 'sigmoid':
            y = pl.reciprocal(1.0 + jnp.exp(-y), approx=True)
        o_ref[...] = y.astype(o_ref.dtype)


def prep_matmul(w2d, scale, bias):
    """Pad / cast weights + fused affine once (build time), pick tiles from (K, N)."""
    K, N = w2d.shape
    Kp, Np = _round_up(K, 128), _round_up(N, 128)
    tk = _pick_tile(Kp, 1536)
    # Keep >=2 N-tiles for the wide layers so the j axis can shard across 2 TCs (v7x).
    tn = _pick_tile(Np, max(128, min(512, Np // 2)))
    wp = jnp.pad(w2d, ((0, Kp - K), (0, Np - N))).astype(jnp.bfloat16)
    sp = jnp.pad(scale.astype(jnp.float32), (0, Np - N)).reshape(1, Np)
    bp = jnp.pad(bias.astype(jnp.float32), (0, Np - N)).reshape(1, Np)
    return dict(w=wp, scale=sp, bias=bp, K=K, N=N, tk=tk, tn=tn)


def matmul_fused(x, prep, act):
    """y = act((x @ w) * scale + bias); bf16 MXU operands, f32 accumulation/epilogue."""
    M = x.shape[0]
    K, N = prep['K'], prep['N']
    wp, sp, bp = prep['w'], prep['scale'], prep['bias']
    Kp, Np = wp.shape
    tk, tn = prep['tk'], prep['tn']
    tm = min(128, _round_up(M, 16))          # bf16 min sublane tile = 16
    Mp = _round_up(M, tm)

    xb = x.astype(jnp.bfloat16)
    if (Mp, Kp) != (M, K):
        xb = jnp.pad(xb, ((0, Mp - M), (0, Kp - K)))

    kern = functools.partial(_matmul_kernel, act=act)
    out = pl.pallas_call(
        kern,
        out_shape=jax.ShapeDtypeStruct((Mp, Np), jnp.float32),
        grid_spec=pltpu.PrefetchScalarGridSpec(
            num_scalar_prefetch=0,
            grid=(Mp // tm, Np // tn, Kp // tk),
            in_specs=[
                pl.BlockSpec((tm, tk), lambda i, j, k: (i, k)),
                pl.BlockSpec((tk, tn), lambda i, j, k: (k, j)),
                pl.BlockSpec((1, tn), lambda i, j, k: (0, j)),
                pl.BlockSpec((1, tn), lambda i, j, k: (0, j)),
            ],
            out_specs=pl.BlockSpec((tm, tn), lambda i, j, k: (i, j)),
            scratch_shapes=[pltpu.VMEM((tm, tn), jnp.float32)],
        ),
        compiler_params=pltpu.CompilerParams(
            dimension_semantics=("parallel", "parallel", "arbitrary"),
            vmem_limit_bytes=32 * 1024 * 1024),
    )(xb, wp, sp, bp)
    return out[:M, :N]


def _maxpool_kernel(x_ref, o_ref):
    ow = o_ref.shape[1]
    x = x_ref[...]                                       # (tb, 2*OW, 2, C)
    m = jnp.maximum(x[:, :, 0:1, :], x[:, :, 1:2, :])    # max over W pairs
    o_ref[...] = jnp.maximum(m[:, :ow], m[:, ow:])       # max over H pairs


def maxpool2x2(x):
    """MaxPool2d((2,2), stride (2,2)) on NHWC input — single gridded kernel,
    no strided-view or padded copies (the reshape below is copy-free)."""
    Nb, H, W, C = x.shape
    assert H % 2 == 0 and W % 2 == 0, "MaxPool2d(2,2) requires even spatial dims"
    OH, OW = H // 2, W // 2
    M = Nb * OH
    # Row-major identity:  (m, i*OW + ow, j, c)  <->  (n, 2*oh + i, 2*ow + j, c)
    xr = x.reshape(M, 2 * OW, 2, C)
    tb = math.gcd(M, 8)
    out = pl.pallas_call(
        _maxpool_kernel,
        out_shape=jax.ShapeDtypeStruct((M, OW, 1, C), x.dtype),
        grid=(M // tb,),
        in_specs=[pl.BlockSpec((tb, 2 * OW, 2, C), lambda i: (i, 0, 0, 0))],
        out_specs=pl.BlockSpec((tb, OW, 1, C), lambda i: (i, 0, 0, 0)),
    )(xr)
    return out.reshape(Nb, OH, OW, C)


# ------------------------------- JAX glue -----------------------------------

def im2col(x, kh, kw, stride, pad):
    Nb, H, W, C = x.shape
    xp = jnp.pad(x, ((0, 0), (pad, pad), (pad, pad), (0, 0)))
    OH = (H + 2 * pad - kh) // stride + 1
    OW = (W + 2 * pad - kw) // stride + 1
    cols = []
    for i in range(kh):
        for j in range(kw):
            cols.append(xp[:, i:i + stride * (OH - 1) + 1:stride,
                            j:j + stride * (OW - 1) + 1:stride, :])
    patches = jnp.stack(cols, axis=3)                      # (N, OH, OW, kh*kw, C)
    return patches.reshape(Nb * OH * OW, kh * kw * C), OH, OW


def cnn_block(x, p):
    # im2col in bf16 (halves patch materialization traffic); matmul accumulates in f32.
    patches, OH, OW = im2col(x.astype(jnp.bfloat16),
                             p['kh'], p['kw'], p['stride'], p['pad'])
    y = matmul_fused(patches, p['mm'], 'leaky')
    return y.reshape(x.shape[0], OH, OW, p['mm']['N'])


def build_params(key, in_channels, S, B, C):
    params = []
    cin = in_channels

    def add_conv(k, cout, s, pdg):
        nonlocal cin, key
        key, sub = jax.random.split(key)
        w = jax.random.normal(sub, (k, k, cin, cout), jnp.float32)
        w = w * (1.0 / (k * k * cin)) ** 0.5
        # Fold inference-mode BatchNorm (init defaults) into scale/bias.
        gamma = jnp.ones((cout,), jnp.float32)
        beta = jnp.zeros((cout,), jnp.float32)
        mean = jnp.zeros((cout,), jnp.float32)
        var = jnp.ones((cout,), jnp.float32)
        scale = gamma / jnp.sqrt(var + 1e-5)
        bias = beta - mean * scale
        mm = prep_matmul(w.reshape(k * k * cin, cout), scale, bias)
        params.append(dict(type='conv', kh=k, kw=k, stride=s, pad=pdg, mm=mm))
        cin = cout

    for item in ARCH:
        if isinstance(item, tuple):
            add_conv(*item)
        elif isinstance(item, str):
            params.append(dict(type='pool'))
        else:
            c1, c2, reps = item
            for _ in range(reps):
                add_conv(*c1)
                add_conv(*c2)

    key, k1, k2 = jax.random.split(key, 3)
    d_in = 1024 * S * S
    d_out = S * S * (C + B * 5)
    fc1 = prep_matmul(
        jax.random.normal(k1, (d_in, 4096), jnp.float32) * (1.0 / d_in) ** 0.5,
        jnp.ones((4096,), jnp.float32), jnp.zeros((4096,), jnp.float32))
    fc2 = prep_matmul(
        jax.random.normal(k2, (4096, d_out), jnp.float32) * (1.0 / 4096) ** 0.5,
        jnp.ones((d_out,), jnp.float32), jnp.zeros((d_out,), jnp.float32))
    return params, (fc1, fc2)


def yolov1_forward(x_nchw, params, fc, S, B, C):
    x = jnp.transpose(x_nchw, (0, 2, 3, 1))               # NCHW -> NHWC
    for p in params:
        if p['type'] == 'conv':
            x = cnn_block(x, p)
        else:
            x = maxpool2x2(x)
    Nb = x.shape[0]
    # torch.flatten(x, start_dim=1) on NCHW -> channel-major flatten.
    flat = jnp.transpose(x, (0, 3, 1, 2)).reshape(Nb, -1)
    fc1, fc2 = fc
    h = matmul_fused(flat, fc1, 'leaky')                   # Dropout(p=0.0) == identity
    out = matmul_fused(h, fc2, 'sigmoid')
    return out.reshape(-1, S, S, C + B * 5)


if __name__ == "__main__":
    # Small configuration: split_size S=1, num_boxes B=2, num_classes C=3.
    # Darknet reduces spatial by 64x, so input spatial = 64*S = 64.
    S, B, C = 1, 2, 3
    batch, in_channels, spatial = 2, 3, 64 * S

    key = jax.random.PRNGKey(0)
    key, pkey, xkey = jax.random.split(key, 3)
    params, fc = build_params(pkey, in_channels, S, B, C)
    x = jax.random.normal(xkey, (batch, in_channels, spatial, spatial), jnp.float32)

    out = yolov1_forward(x, params, fc, S, B, C)
    out = jax.block_until_ready(out)
    assert out.shape == (batch, S, S, C + B * 5), out.shape
    assert bool(jnp.all(jnp.isfinite(out)))
    print("KERNEL_OK")
</pallas_src>

<mosaic_0001>
module attributes {stable_mosaic.version = 11 : i64} {
  func.func @_matmul_kernel(%arg0: i32, %arg1: i32, %arg2: i32, %arg3: memref<128x256xbf16, #tpu.memory_space<vmem>>, %arg4: memref<256x128xbf16, #tpu.memory_space<vmem>>, %arg5: memref<1x128xf32, #tpu.memory_space<vmem>>, %arg6: memref<1x128xf32, #tpu.memory_space<vmem>>, %arg7: memref<128x128xf32, #tpu.memory_space<vmem>>, %arg8: memref<128x128xf32, #tpu.memory_space<vmem>>) attributes {dimension_semantics = [#tpu.dimension_semantics<parallel>, #tpu.dimension_semantics<parallel>, #tpu.dimension_semantics<arbitrary>], iteration_bounds = array<i64: 16, 1, 1>, scalar_prefetch = 0 : i64, scratch_operands = 1 : i64, tpu.core_type = #tpu.core_type<tc>, window_params = [{transform_indices = @transform_0, window_bounds = array<i64: 128, 256>}, {transform_indices = @transform_1, window_bounds = array<i64: 256, 128>}, {transform_indices = @transform_2, window_bounds = array<i64: 1, 128>}, {transform_indices = @transform_3, window_bounds = array<i64: 1, 128>}, {transform_indices = @transform_4, window_bounds = array<i64: 128, 128>}]} {
    %c0_i32 = arith.constant 0 : i32
    %0 = arith.cmpi eq, %arg2, %c0_i32 : i32
    %1 = arith.extui %0 : i1 to i32
    %c0_i32_0 = arith.constant 0 : i32
    %2 = arith.cmpi ne, %1, %c0_i32_0 : i32
    scf.if %2 {
      %cst_10 = arith.constant 0.000000e+00 : f32
      %12 = vector.broadcast %cst_10 : f32 to vector<128x128xf32>
      %c0_11 = arith.constant 0 : index
      %c0_12 = arith.constant 0 : index
      %13 = vector.load %arg8[%c0_11, %c0_12] : memref<128x128xf32, #tpu.memory_space<vmem>>, vector<128x128xf32>
      tpu.vector_store %arg8[%c0_11, %c0_12], %12 {strides = array<i32>} : memref<128x128xf32, #tpu.memory_space<vmem>>, vector<128x128xf32>,
    } else {
    }
    %c0 = arith.constant 0 : index
    %c0_1 = arith.constant 0 : index
    %3 = vector.load %arg8[%c0, %c0_1] : memref<128x128xf32, #tpu.memory_space<vmem>>, vector<128x128xf32>
    %c0_2 = arith.constant 0 : index
    %c0_3 = arith.constant 0 : index
    %4 = vector.load %arg3[%c0_2, %c0_3] : memref<128x256xbf16, #tpu.memory_space<vmem>>, vector<128x256xbf16>
    %c0_4 = arith.constant 0 : index
    %c0_5 = arith.constant 0 : index
    %5 = vector.load %arg4[%c0_4, %c0_5] : memref<256x128xbf16, #tpu.memory_space<vmem>>, vector<256x128xbf16>
    %cst = arith.constant dense<0.000000e+00> : vector<128x128xf32>
    %6 = tpu.matmul %4, %5, %cst {dimension_numbers = #tpu.dot_dimension_numbers<[1], [0], [0], [1], [0, 0, 1, 1], [], []>} : vector<128x256xbf16>, vector<256x128xbf16>, vector<128x128xf32> -> vector<128x128xf32>
    %7 = arith.addf %3, %6 : vector<128x128xf32>
    %c0_6 = arith.constant 0 : index
    %c0_7 = arith.constant 0 : index
    %8 = vector.load %arg8[%c0_6, %c0_7] : memref<128x128xf32, #tpu.memory_space<vmem>>, vector<128x128xf32>
    tpu.vector_store %arg8[%c0_6, %c0_7], %7 {strides = array<i32>} : memref<128x128xf32, #tpu.memory_space<vmem>>, vector<128x128xf32>,
    %c0_i32_8 = arith.constant 0 : i32
    %9 = arith.cmpi eq, %arg2, %c0_i32_8 : i32
    %10 = arith.extui %9 : i1 to i32
    %c0_i32_9 = arith.constant 0 : i32
    %11 = arith.cmpi ne, %10, %c0_i32_9 : i32
    scf.if %11 {
      %c0_10 = arith.constant 0 : index
      %c0_11 = arith.constant 0 : index
      %12 = vector.load %arg8[%c0_10, %c0_11] : memref<128x128xf32, #tpu.memory_space<vmem>>, vector<128x128xf32>
      %c0_12 = arith.constant 0 : index
      %c0_13 = arith.constant 0 : index
      %13 = vector.load %arg5[%c0_12, %c0_13] : memref<1x128xf32, #tpu.memory_space<vmem>>, vector<1x128xf32>
      %14 = vector.broadcast %13 : vector<1x128xf32> to vector<128x128xf32>
      %15 = arith.mulf %12, %14 : vector<128x128xf32>
      %c0_14 = arith.constant 0 : index
      %c0_15 = arith.constant 0 : index
      %16 = vector.load %arg6[%c0_14, %c0_15] : memref<1x128xf32, #tpu.memory_space<vmem>>, vector<1x128xf32>
      %17 = vector.broadcast %16 : vector<1x128xf32> to vector<128x128xf32>
      %18 = arith.addf %15, %17 : vector<128x128xf32>
      %cst_16 = arith.constant 0.000000e+00 : f32
      %19 = vector.broadcast %cst_16 : f32 to vector<128x128xf32>
      %20 = arith.cmpf ogt, %18, %19 : vector<128x128xf32>
      %cst_17 = arith.constant 1.000000e-01 : f32
      %21 = vector.broadcast %cst_17 : f32 to vector<128x128xf32>
      %22 = arith.mulf %21, %18 : vector<128x128xf32>
      %23 = arith.select %20, %18, %22 : vector<128x128xi1>, vector<128x128xf32>
      %c0_18 = arith.constant 0 : index
      %c0_19 = arith.constant 0 : index
      %24 = vector.load %arg7[%c0_18, %c0_19] : memref<128x128xf32, #tpu.memory_space<vmem>>, vector<128x128xf32>
      tpu.vector_store %arg7[%c0_18, %c0_19], %23 {strides = array<i32>} : memref<128x128xf32, #tpu.memory_space<vmem>>, vector<128x128xf32>,
    } else {
    }
    return
  }
  func.func @transform_0(%arg0: i32, %arg1: i32, %arg2: i32) -> (i32, i32) {
    %c0_i32 = arith.constant 0 : i32
    return %arg0, %arg2 : i32, i32
  }
  func.func @transform_1(%arg0: i32, %arg1: i32, %arg2: i32) -> (i32, i32) {
    %c0_i32 = arith.constant 0 : i32
    return %arg2, %arg1 : i32, i32
  }
  func.func @transform_2(%arg0: i32, %arg1: i32, %arg2: i32) -> (i32, i32) {
    %c0_i32 = arith.constant 0 : i32
    %c0_i32_0 = arith.constant 0 : i32
    return %c0_i32, %arg1 : i32, i32
  }
  func.func @transform_3(%arg0: i32, %arg1: i32, %arg2: i32) -> (i32, i32) {
    %c0_i32 = arith.constant 0 : i32
    %c0_i32_0 = arith.constant 0 : i32
    return %c0_i32, %arg1 : i32, i32
  }
  func.func @transform_4(%arg0: i32, %arg1: i32, %arg2: i32) -> (i32, i32) {
    %c0_i32 = arith.constant 0 : i32
    return %arg0, %arg1 : i32, i32
  }
}

</mosaic_0001>

<llo_original>
// kernel: tpu_custom_call.1
$region0: #{tpu_custom_call.1}
  #allocation0 [shape = 'u32[]', space=smem, size = 0x4, offset = 0x4, fixed_abs, tag = 'smem constant byte address 0x4 - core index']
  #allocation1 [shape = 'u32[144,128]{1,0:T(1,128)}', space=vmem, size = 0x12000, scoped, tag = 'internal scratch']
  #allocation2 [shape = 'f32[128,128]{1,0:T(8,128)}', space=vmem, size = 0x10000, scoped, tag = 'scratch operand']
  %s0 = inlined_call_operand.hbm [shape: bf16[2048,256], index: 0, kind: input, shape index: {}]
  %s1 = inlined_call_operand.hbm [shape: bf16[256,128], index: 1, kind: input, shape index: {}]
  %s2 = inlined_call_operand.vmem [shape: f32[1,128], index: 2, kind: input, shape index: {}]
  %s3 = inlined_call_operand.vmem [shape: f32[1,128], index: 3, kind: input, shape index: {}]
  %s4 = inlined_call_operand.hbm [shape: f32[2048,128], index: 4, kind: output, shape index: {}]
  %s5 = sld [smem:[#allocation0]]
  $region65: #{tpu_custom_call.1} parent=0
    _
  %s7 = ssub.s32 1, %s5
  %s8 = scalar_select 0, %s7, %s5
  $region1: #{tpu_custom_call.1} parent=0
    #allocation3 [shape = 'u8[131072]{0}', space=vmem, size = 0x20000, scoped, tag = 'input window, operand 0']
    #allocation4 [shape = 's32[2]{0}', space=sflag, size = 0x8, scoped, tag = 'scoped memory for tpu_custom_call.1']
    #allocation5 [shape = 's32[2]{0}', space=sflag, size = 0x8, scoped, tag = 'scoped memory for tpu_custom_call.1']
    #allocation6 [shape = 'u8[65536]{0}', space=vmem, size = 0x10000, scoped, tag = 'input window, operand 1, single buffered']
    #allocation7 [shape = 's32[1]{0}', space=sflag, size = 0x4, scoped, tag = 'scoped memory for tpu_custom_call.1']
    #allocation8 [shape = 'u8[131072]{0}', space=vmem, size = 0x20000, scoped, tag = 'output window, operand 0']
    %9 = vsyncpa [#allocation4], 0
    %s10 = scalar_lea.sflag [#allocation4], 1
    %11 = vsyncpa %s10, 0
    %12 = vsyncpa [#allocation7], 0
    %13 = vsyncpa [#allocation5], 0
    %s14 = scalar_lea.sflag [#allocation5], 1
    %15 = vsyncpa %s14, 0
    loop: start=0, step=1, limit=18
    $region2: #{tpu_custom_call.1} parent=1 // loop_pre_header
      _
    $region3: #{tpu_custom_call.1} parent=1 // loop_header
      %s17 = sphi 0, %s21
      %p18 = scmp.ge.s32.totalorder %s17, 18
      %s24 = sphi 0, %s43
      %s25 = sphi 0, %s39
      %s26 = sphi 0, %s35
      %s27 = sphi 0, %s24
      %s28 = sphi 0, %s25
      %s29 = sphi 0, %s26
      %s30 = sphi 0, %s27
      %s31 = sphi 0, %s28
      %s32 = sphi 0, %s29
      %s48 = sphi 0, %s50
      %s51 = sphi 0, %s48
      %s52 = sphi 0, %s51
      %s68 = sphi 0, %s52
      %s76 = sphi 0, %s78
      %s79 = sphi 0, %s76
      %s80 = sphi 0, %s79
      %s96 = sphi 0, %s80
      %s102 = sphi 0, %s104
      %s105 = sphi 0, %s102
      %s106 = sphi 0, %s105
      %s122 = sphi 0, %s106
      %s128 = sphi 0, %s130
      %s131 = sphi 0, %s128
      %s132 = sphi 0, %s131
      %s148 = sphi 0, %s132
      %s156 = sphi 0, %s158
      %s159 = sphi 0, %s156
      %s160 = sphi 0, %s159
      %s176 = sphi 0, %s160
    $region4: #{tpu_custom_call.1} parent=1 // loop_header_branch
      %20 = sbr.rel (%p18) target = $region8
    $region5: #{tpu_custom_call.1} parent=1 // loop_body
      %s22 = ssub.s32 %s17, 1
      %s23 = ssub.s32 %s17, 2
      %s33 = sadd.s32 1, %s26
      %p34 = scmp.ge.s32.totalorder %s33, 1
      %s35 = scalar_select %p34, 0, %s33
      %s36 = sadd.s32 1, %s25
      %s37 = scalar_select %p34, %s36, %s25
      %p38 = scmp.ge.s32.totalorder %s37, 1
      %s39 = scalar_select %p38, 0, %s37
      %s40 = sadd.s32 1, %s24
      %s41 = scalar_select %p38, %s40, %s24
      %p42 = scmp.ge.s32.totalorder %s41, 16
      %s43 = scalar_select %p42, 0, %s41
      %s44 = ssub.s32 %s24, %s43
      %s45 = ssub.s32 %s26, %s35
      %s46 = sor.u32 %s44, %s45
      %p47 = scmp.eq.s32.totalorder %s46, 0
      %s49 = sadd.s32 %s48, 1
      %s50 = scalar_select %p47, %s48, %s49
      %p53 = pneg %p47
      %p54 = scmp.eq.s32.totalorder %s17, 15
      %p55 = por %p53, %p54
      %p56 = scmp.ne.s32.totalorder %s48, %s51
      %p57 = scmp.eq.s32.totalorder %s17, 0
      %p58 = por %p56, %p57
      %p59 = scmp.ne.s32.totalorder %s48, %s51
      %p60 = scmp.eq.s32.totalorder %s22, 15
      %p61 = por %p59, %p60
      %p62 = scmp.ne.s32.totalorder %s51, %s52
      %p63 = scmp.eq.s32.totalorder %s22, 0
      %p64 = por %p62, %p63
      %p65 = scmp.ne.s32.totalorder %s51, %s52
      %p66 = scmp.eq.s32.totalorder %s23, 15
      %p67 = por %p65, %p66
      %p69 = scmp.ne.s32.totalorder %s52, %s68
      %p70 = scmp.eq.s32.totalorder %s23, 0
      %p71 = por %p69, %p70
      %s72 = ssub.s32 %s26, %s35
      %s73 = ssub.s32 %s25, %s39
      %s74 = sor.u32 %s72, %s73
      %p75 = scmp.eq.s32.totalorder %s74, 0
      %s77 = sadd.s32 %s76, 1
      %s78 = scalar_select %p75, %s76, %s77
      %p81 = pneg %p75
      %p82 = scmp.eq.s32.totalorder %s17, 15
      %p83 = por %p81, %p82
      %p84 = scmp.ne.s32.totalorder %s76, %s79
      %p85 = scmp.eq.s32.totalorder %s17, 0
      %p86 = por %p84, %p85
      %p87 = scmp.ne.s32.totalorder %s76, %s79
      %p88 = scmp.eq.s32.totalorder %s22, 15
      %p89 = por %p87, %p88
      %p90 = scmp.ne.s32.totalorder %s79, %s80
      %p91 = scmp.eq.s32.totalorder %s22, 0
      %p92 = por %p90, %p91
      %p93 = scmp.ne.s32.totalorder %s79, %s80
      %p94 = scmp.eq.s32.totalorder %s23, 15
      %p95 = por %p93, %p94
      %p97 = scmp.ne.s32.totalorder %s80, %s96
      %p98 = scmp.eq.s32.totalorder %s23, 0
      %p99 = por %p97, %p98
      %s100 = ssub.s32 %s25, %s39
      %p101 = scmp.eq.s32.totalorder %s100, 0
      %s103 = sadd.s32 %s102, 1
      %s104 = scalar_select %p101, %s102, %s103
      %p107 = pneg %p101
      %p108 = scmp.eq.s32.totalorder %s17, 15
      %p109 = por %p107, %p108
      %p110 = scmp.ne.s32.totalorder %s102, %s105
      %p111 = scmp.eq.s32.totalorder %s17, 0
      %p112 = por %p110, %p111
      %p113 = scmp.ne.s32.totalorder %s102, %s105
      %p114 = scmp.eq.s32.totalorder %s22, 15
      %p115 = por %p113, %p114
      %p116 = scmp.ne.s32.totalorder %s105, %s106
      %p117 = scmp.eq.s32.totalorder %s22, 0
      %p118 = por %p116, %p117
      %p119 = scmp.ne.s32.totalorder %s105, %s106
      %p120 = scmp.eq.s32.totalorder %s23, 15
      %p121 = por %p119, %p120
      %p123 = scmp.ne.s32.totalorder %s106, %s122
      %p124 = scmp.eq.s32.totalorder %s23, 0
      %p125 = por %p123, %p124
      %s126 = ssub.s32 %s25, %s39
      %p127 = scmp.eq.s32.totalorder %s126, 0
      %s129 = sadd.s32 %s128, 1
      %s130 = scalar_select %p127, %s128, %s129
      %p133 = pneg %p127
      %p134 = scmp.eq.s32.totalorder %s17, 15
      %p135 = por %p133, %p134
      %p136 = scmp.ne.s32.totalorder %s128, %s131
      %p137 = scmp.eq.s32.totalorder %s17, 0
      %p138 = por %p136, %p137
      %p139 = scmp.ne.s32.totalorder %s128, %s131
      %p140 = scmp.eq.s32.totalorder %s22, 15
      %p141 = por %p139, %p140
      %p142 = scmp.ne.s32.totalorder %s131, %s132
      %p143 = scmp.eq.s32.totalorder %s22, 0
      %p144 = por %p142, %p143
      %p145 = scmp.ne.s32.totalorder %s131, %s132
      %p146 = scmp.eq.s32.totalorder %s23, 15
      %p147 = por %p145, %p146
      %p149 = scmp.ne.s32.totalorder %s132, %s148
      %p150 = scmp.eq.s32.totalorder %s23, 0
      %p151 = por %p149, %p150
      %s152 = ssub.s32 %s24, %s43
      %s153 = ssub.s32 %s25, %s39
      %s154 = sor.u32 %s152, %s153
      %p155 = scmp.eq.s32.totalorder %s154, 0
      %s157 = sadd.s32 %s156, 1
      %s158 = scalar_select %p155, %s156, %s157
      %p161 = pneg %p155
      %p162 = scmp.eq.s32.totalorder %s17, 15
      %p163 = por %p161, %p162
      %p164 = scmp.ne.s32.totalorder %s156, %s159
      %p165 = scmp.eq.s32.totalorder %s17, 0
      %p166 = por %p164, %p165
      %p167 = scmp.ne.s32.totalorder %s156, %s159
      %p168 = scmp.eq.s32.totalorder %s22, 15
      %p169 = por %p167, %p168
      %p170 = scmp.ne.s32.totalorder %s159, %s160
      %p171 = scmp.eq.s32.totalorder %s22, 0
      %p172 = por %p170, %p171
      %p173 = scmp.ne.s32.totalorder %s159, %s160
      %p174 = scmp.eq.s32.totalorder %s23, 15
      %p175 = por %p173, %p174
      %p177 = scmp.ne.s32.totalorder %s160, %s176
      %p178 = scmp.eq.s32.totalorder %s23, 0
      %p179 = por %p177, %p178
      %p180 = scmp.le.s32.totalorder 1, %s17
      %p181 = scmp.lt.s32.totalorder %s17, 17
      %p182 = pnand %p180, %p181
      %p183 = pneg %p182
      // Predicated region
      $region9: #{tpu_custom_call.1} parent=5 // pred_check
        _
      $region10: #{tpu_custom_call.1} parent=5 // pred_check_branch
        %185 = sbr.rel (%p182) target = $region12
      $region11: #{tpu_custom_call.1} parent=5 // pred_region
        %s186 = ssub.s32 %s17, 1
        // Predicated region
        $region13: #{tpu_custom_call.1} parent=11 // pred_check
          %p187 = pneg %p92
        $region14: #{tpu_custom_call.1} parent=11 // pred_check_branch
          %189 = sbr.rel (%p187) target = $region16
        $region15: #{tpu_custom_call.1} parent=11 // pred_region
          %s190 = smul.u32 32, %s29
          %s192 = ssub.s32 2048, 2048
          %193 = vsyncadd [#allocation7], %s192
          %s194 = sadd.s32 %s28, %s190
          %s195 = smul.addr %s194, 64
          %s196 = scalar_lea.hbm %s1, %s195
          %s197 = sshll.u32 [#allocation6], 4
          %s198 = int_to_ptr.vmem [resolvable:$true] %s197
          %203 = dma.hbm_to_vmem [thread:$0]  %s196, 2048, %s198, [#allocation7], 64, 64, 4
        $region16: #{tpu_custom_call.1} parent=11 // pred_fallthru
          _
        // Predicated region
        $region17: #{tpu_custom_call.1} parent=11 // pred_check
          %p204 = pneg %p118
        $region18: #{tpu_custom_call.1} parent=11 // pred_check_branch
          %206 = sbr.rel (%p204) target = $region20
        $region19: #{tpu_custom_call.1} parent=11 // pred_region
          %p207 = scmp.lt.s32.totalorder %s28, 0
          %s208 = scalar_select %p207, %s28, 0
          %s209 = scalar_lea.vmem %s2, %s208
        $region20: #{tpu_custom_call.1} parent=11 // pred_fallthru
          _
        // Predicated region
        $region21: #{tpu_custom_call.1} parent=11 // pred_check
          %p210 = pneg %p144
        $region22: #{tpu_custom_call.1} parent=11 // pred_check_branch
          %212 = sbr.rel (%p210) target = $region24
        $region23: #{tpu_custom_call.1} parent=11 // pred_region
          %p213 = scmp.lt.s32.totalorder %s28, 0
          %s214 = scalar_select %p213, %s28, 0
          %s215 = scalar_lea.vmem %s3, %s214
        $region24: #{tpu_custom_call.1} parent=11 // pred_fallthru
          _
      $region12: #{tpu_custom_call.1} parent=5 // pred_fallthru
        _
      %p216 = scmp.lt.s32.totalorder %s17, 16
      // Predicated region
      $region25: #{tpu_custom_call.1} parent=5 // pred_check
        %p217 = pneg %p216
      $region26: #{tpu_custom_call.1} parent=5 // pred_check_branch
        %219 = sbr.rel (%p217) target = $region28
      $region27: #{tpu_custom_call.1} parent=5 // pred_region
        // Predicated region
        $region29: #{tpu_custom_call.1} parent=27 // pred_check
          %p220 = pneg %p58
        $region30: #{tpu_custom_call.1} parent=27 // pred_check_branch
          %222 = sbr.rel (%p220) target = $region32
        $region31: #{tpu_custom_call.1} parent=27 // pred_region
          %s223 = sand.u32 %s48, 1
          %s224 = scalar_lea.sflag [#allocation4], %s223
          %s225 = sand.u32 %s48, 1
          %s226 = smul.addr %s225, 128
          %s227 = scalar_lea.vmem [#allocation3], %s226
          %s228 = smul.u32 16, %s24
          %s229 = smul.u32 2, %s26
          %s231 = ssub.s32 2048, 2048
          %232 = vsyncadd %s224, %s231
          %s233 = smul.addr %s228, 2
          %s234 = sadd.s32 %s229, %s233
          %s235 = smul.addr %s234, 64
          %s236 = scalar_lea.hbm %s0, %s235
          %s237 = sshll.u32 %s227, 4
          %s238 = int_to_ptr.vmem [resolvable:$true] %s237
          %243 = dma.hbm_to_vmem [thread:$0]  %s236, 2048, %s238, %s224, 128, 128, 8
        $region32: #{tpu_custom_call.1} parent=27 // pred_fallthru
          _
      $region28: #{tpu_custom_call.1} parent=5 // pred_fallthru
        _
      %p244 = scmp.le.s32.totalorder 1, %s17
      %p245 = scmp.lt.s32.totalorder %s17, 17
      %p246 = pnand %p244, %p245
      %p247 = pneg %p246
      // Predicated region
      $region33: #{tpu_custom_call.1} parent=5 // pred_check
        _
      $region34: #{tpu_custom_call.1} parent=5 // pred_check_branch
        %249 = sbr.rel (%p246) target = $region36
      $region35: #{tpu_custom_call.1} parent=5 // pred_region
        %s250 = ssub.s32 %s17, 1
        %s251 = sand.u32 %s51, 1
        %s252 = scalar_lea.sflag [#allocation4], %s251
        %s253 = sand.u32 %s51, 1
        %s254 = smul.addr %s253, 128
        %s255 = scalar_lea.vmem [#allocation3], %s254
        // Predicated region
        $region37: #{tpu_custom_call.1} parent=35 // pred_check
          %p256 = pneg %p64
        $region38: #{tpu_custom_call.1} parent=35 // pred_check_branch
          %258 = sbr.rel (%p256) target = $region40
        $region39: #{tpu_custom_call.1} parent=35 // pred_region
          %259 = dma.done %s252, 2048
        $region40: #{tpu_custom_call.1} parent=35 // pred_fallthru
          _
        // Predicated region
        $region41: #{tpu_custom_call.1} parent=35 // pred_check
          %p260 = pneg %p92
        $region42: #{tpu_custom_call.1} parent=35 // pred_check_branch
          %262 = sbr.rel (%p260) target = $region44
        $region43: #{tpu_custom_call.1} parent=35 // pred_region
          %263 = dma.done [#allocation7], 2048
        $region44: #{tpu_custom_call.1} parent=35 // pred_fallthru
          _
        %s264 = sand.u32 %s51, 1
        %s265 = scalar_lea.sflag [#allocation4], %s264
        %s266 = sand.u32 %s51, 1
        %s267 = smul.addr %s266, 128
        %s268 = scalar_lea.vmem [#allocation3], %s267
        %p269 = pneg %p64
        %p270 = pneg %p61
        %p271 = pneg %p92
        %p272 = pneg %p89
        %p273 = scmp.lt.s32.totalorder %s28, 0
        %s274 = scalar_select %p273, %s28, 0
        %s275 = scalar_lea.vmem %s2, %s274
        %p276 = pneg %p118
        %p277 = pneg %p115
        %p278 = scmp.lt.s32.totalorder %s28, 0
        %s279 = scalar_select %p278, %s28, 0
        %s280 = scalar_lea.vmem %s3, %s279
        %p281 = pneg %p144
        %p282 = pneg %p141
        %p283 = pneg %p172
        %p284 = pneg %p169
        %s285 = sand.u32 %s159, 1
        %s286 = scalar_lea.sflag [#allocation5], %s285
        %s287 = sand.u32 %s159, 1
        %s288 = smul.addr %s287, 128
        %s289 = scalar_lea.vmem [#allocation8], %s288
        %s290 = smul.u32 16, %s27
        %s291 = smul.u32 2, %s29
        %s292 = smul.u32 32, %s29
        %p293 = scmp.lt.s32.totalorder %s28, 0
        %s294 = scalar_select %p293, %s28, 0
        %s295 = scalar_lea.vmem %s2, %s294
        %p296 = scmp.lt.s32.totalorder %s28, 0
        %s297 = scalar_select %p296, %s28, 0
        %s298 = scalar_lea.vmem %s3, %s297
        %s299 = smul.u32 16, %s27
        %p301 = scmp.eq.s32.totalorder %s29, 0
        // Predicated region
        $region45: #{tpu_custom_call.1} parent=35 // pred_check
          %p302 = pneg %p301
        $region46: #{tpu_custom_call.1} parent=35 // pred_check_branch
          %304 = sbr.rel (%p302) target = $region48
        $region47: #{tpu_custom_call.1} parent=35 // pred_region
          %305 = vst [vmem:[#allocation2] sm:$0xff] 0.0
          %306 = vst [vmem:[#allocation2 + $0x8] sm:$0xff] 0.0
          %307 = vst [vmem:[#allocation2 + $0x10] sm:$0xff] 0.0
          %308 = vst [vmem:[#allocation2 + $0x18] sm:$0xff] 0.0
          %309 = vst [vmem:[#allocation2 + $0x20] sm:$0xff] 0.0
          %310 = vst [vmem:[#allocation2 + $0x28] sm:$0xff] 0.0
          %311 = vst [vmem:[#allocation2 + $0x30] sm:$0xff] 0.0
          %312 = vst [vmem:[#allocation2 + $0x38] sm:$0xff] 0.0
          %313 = vst [vmem:[#allocation2 + $0x40] sm:$0xff] 0.0
          %314 = vst [vmem:[#allocation2 + $0x48] sm:$0xff] 0.0
          %315 = vst [vmem:[#allocation2 + $0x50] sm:$0xff] 0.0
          %316 = vst [vmem:[#allocation2 + $0x58] sm:$0xff] 0.0
          %317 = vst [vmem:[#allocation2 + $0x60] sm:$0xff] 0.0
          %318 = vst [vmem:[#allocation2 + $0x68] sm:$0xff] 0.0
          %319 = vst [vmem:[#allocation2 + $0x70] sm:$0xff] 0.0
          %320 = vst [vmem:[#allocation2 + $0x78] sm:$0xff] 0.0
        $region48: #{tpu_custom_call.1} parent=35 // pred_fallthru
          _
        %v321 = vld [vmem:[#allocation2] sm:$0xff]
        %v322 = vld [vmem:[#allocation2 + $0x8] sm:$0xff]
        %v323 = vld [vmem:[#allocation2 + $0x10] sm:$0xff]
        %v324 = vld [vmem:[#allocation2 + $0x18] sm:$0xff]
        %v325 = vld [vmem:[#allocation2 + $0x20] sm:$0xff]
        %v326 = vld [vmem:[#allocation2 + $0x28] sm:$0xff]
        %v327 = vld [vmem:[#allocation2 + $0x30] sm:$0xff]
        %v328 = vld [vmem:[#allocation2 + $0x38] sm:$0xff]
        %v329 = vld [vmem:[#allocation2 + $0x40] sm:$0xff]
        %v330 = vld [vmem:[#allocation2 + $0x48] sm:$0xff]
        %v331 = vld [vmem:[#allocation2 + $0x50] sm:$0xff]
        %v332 = vld [vmem:[#allocation2 + $0x58] sm:$0xff]
        %v333 = vld [vmem:[#allocation2 + $0x60] sm:$0xff]
        %v334 = vld [vmem:[#allocation2 + $0x68] sm:$0xff]
        %v335 = vld [vmem:[#allocation2 + $0x70] sm:$0xff]
        %v336 = vld [vmem:[#allocation2 + $0x78] sm:$0xff]
        %v337 = vld [vmem:[%s255] sm:$0xff]
        %v338 = vld [vmem:[%s255 + $0x8] sm:$0xff]
        %v339 = vld [vmem:[%s255 + $0x10] sm:$0xff]
        %v340 = vld [vmem:[%s255 + $0x18] sm:$0xff]
        %v341 = vld [vmem:[%s255 + $0x20] sm:$0xff]
        %v342 = vld [vmem:[%s255 + $0x28] sm:$0xff]
        %v343 = vld [vmem:[%s255 + $0x30] sm:$0xff]
        %v344 = vld [vmem:[%s255 + $0x38] sm:$0xff]
        %v345 = vld [vmem:[%s255 + $0x40] sm:$0xff]
        %v346 = vld [vmem:[%s255 + $0x48] sm:$0xff]
        %v347 = vld [vmem:[%s255 + $0x50] sm:$0xff]
        %v348 = vld [vmem:[%s255 + $0x58] sm:$0xff]
        %v349 = vld [vmem:[%s255 + $0x60] sm:$0xff]
        %v350 = vld [vmem:[%s255 + $0x68] sm:$0xff]
        %v351 = vld [vmem:[%s255 + $0x70] sm:$0xff]
        %v352 = vld [vmem:[%s255 + $0x78] sm:$0xff]
        %v353 = vld [vmem:[#allocation6] sm:$0xf]
        %v354 = vld [vmem:[#allocation6 + $0x4] sm:$0xf]
        %v355 = vld [vmem:[#allocation6 + $0x8] sm:$0xf]
        %v356 = vld [vmem:[#allocation6 + $0xc] sm:$0xf]
        %v357 = vld [vmem:[#allocation6 + $0x10] sm:$0xf]
        %v358 = vld [vmem:[#allocation6 + $0x14] sm:$0xf]
        %v359 = vld [vmem:[#allocation6 + $0x18] sm:$0xf]
        %v360 = vld [vmem:[#allocation6 + $0x1c] sm:$0xf]
        %v361 = vld [vmem:[#allocation6 + $0x20] sm:$0xf]
        %v362 = vld [vmem:[#allocation6 + $0x24] sm:$0xf]
        %v363 = vld [vmem:[#allocation6 + $0x28] sm:$0xf]
        %v364 = vld [vmem:[#allocation6 + $0x2c] sm:$0xf]
        %v365 = vld [vmem:[#allocation6 + $0x30] sm:$0xf]
        %v366 = vld [vmem:[#allocation6 + $0x34] sm:$0xf]
        %v367 = vld [vmem:[#allocation6 + $0x38] sm:$0xf]
        %v368 = vld [vmem:[#allocation6 + $0x3c] sm:$0xf]
        %v369 = vld [vmem:[#allocation6 + $0x40] sm:$0xf]
        %v370 = vld [vmem:[#allocation6 + $0x44] sm:$0xf]
        %v371 = vld [vmem:[#allocation6 + $0x48] sm:$0xf]
        %v372 = vld [vmem:[#allocation6 + $0x4c] sm:$0xf]
        %v373 = vld [vmem:[#allocation6 + $0x50] sm:$0xf]
        %v374 = vld [vmem:[#allocation6 + $0x54] sm:$0xf]
        %v375 = vld [vmem:[#allocation6 + $0x58] sm:$0xf]
        %v376 = vld [vmem:[#allocation6 + $0x5c] sm:$0xf]
        %v377 = vld [vmem:[#allocation6 + $0x60] sm:$0xf]
        %v378 = vld [vmem:[#allocation6 + $0x64] sm:$0xf]
        %v379 = vld [vmem:[#allocation6 + $0x68] sm:$0xf]
        %v380 = vld [vmem:[#allocation6 + $0x6c] sm:$0xf]
        %v381 = vld [vmem:[#allocation6 + $0x70] sm:$0xf]
        %v382 = vld [vmem:[#allocation6 + $0x74] sm:$0xf]
        %v383 = vld [vmem:[#allocation6 + $0x78] sm:$0xf]
        %v384 = vld [vmem:[#allocation6 + $0x7c] sm:$0xf]
        %v401 = vunpack.c.l.b16 %v337
        %v402 = vunpack.c.h.b16 %v337
        %v403 = vunpack.c.l.b16 %v338
        %v404 = vunpack.c.h.b16 %v338
        %v405 = vunpack.c.l.b16 %v339
        %v406 = vunpack.c.h.b16 %v339
        %v407 = vunpack.c.l.b16 %v340
        %v408 = vunpack.c.h.b16 %v340
        %v409 = vunpack.c.l.b16 %v341
        %v410 = vunpack.c.h.b16 %v341
        %v411 = vunpack.c.l.b16 %v342
        %v412 = vunpack.c.h.b16 %v342
        %v413 = vunpack.c.l.b16 %v343
        %v414 = vunpack.c.h.b16 %v343
        %v415 = vunpack.c.l.b16 %v344
        %v416 = vunpack.c.h.b16 %v344
        %v417 = vunpack.c.l.b16 %v345
        %v418 = vunpack.c.h.b16 %v345
        %v419 = vunpack.c.l.b16 %v346
        %v420 = vunpack.c.h.b16 %v346
        %v421 = vunpack.c.l.b16 %v347
        %v422 = vunpack.c.h.b16 %v347
        %v423 = vunpack.c.l.b16 %v348
        %v424 = vunpack.c.h.b16 %v348
        %v425 = vunpack.c.l.b16 %v349
        %v426 = vunpack.c.h.b16 %v349
        %v427 = vunpack.c.l.b16 %v350
        %v428 = vunpack.c.h.b16 %v350
        %v429 = vunpack.c.l.b16 %v351
        %v430 = vunpack.c.h.b16 %v351
        %v431 = vunpack.c.l.b16 %v352
        %v432 = vunpack.c.h.b16 %v352
        %v433 = vpack.c.b16 %v403, %v401
        %v434 = vpack.c.b16 %v404, %v402
        %v435 = vpack.c.b16 %v407, %v405
        %v436 = vpack.c.b16 %v408, %v406
        %v437 = vpack.c.b16 %v411, %v409
        %v438 = vpack.c.b16 %v412, %v410
        %v439 = vpack.c.b16 %v415, %v413
        %v440 = vpack.c.b16 %v416, %v414
        %v441 = vpack.c.b16 %v419, %v417
        %v442 = vpack.c.b16 %v420, %v418
        %v443 = vpack.c.b16 %v423, %v421
        %v444 = vpack.c.b16 %v424, %v422
        %v445 = vpack.c.b16 %v427, %v425
        %v446 = vpack.c.b16 %v428, %v426
        %v447 = vpack.c.b16 %v431, %v429
        %v448 = vpack.c.b16 %v432, %v430
        %v497 = vunpack.c.l.b16 %v353
        %v498 = vunpack.c.l.b16 %v354
        %v499 = vunpack.c.l.b16 %v355
        %v500 = vunpack.c.l.b16 %v356
        %v501 = vunpack.c.l.b16 %v357
        %v502 = vunpack.c.l.b16 %v358
        %v503 = vunpack.c.l.b16 %v359
        %v504 = vunpack.c.l.b16 %v360
        %v505 = vunpack.c.l.b16 %v361
        %v506 = vunpack.c.l.b16 %v362
        %v507 = vunpack.c.l.b16 %v363
        %v508 = vunpack.c.l.b16 %v364
        %v509 = vunpack.c.l.b16 %v365
        %v510 = vunpack.c.l.b16 %v366
        %v511 = vunpack.c.l.b16 %v367
        %v512 = vunpack.c.l.b16 %v368
        %v513 = vunpack.c.l.b16 %v369
        %v514 = vunpack.c.l.b16 %v370
        %v515 = vunpack.c.l.b16 %v371
        %v516 = vunpack.c.l.b16 %v372
        %v517 = vunpack.c.l.b16 %v373
        %v518 = vunpack.c.l.b16 %v374
        %v519 = vunpack.c.l.b16 %v375
        %v520 = vunpack.c.l.b16 %v376
        %v521 = vunpack.c.l.b16 %v377
        %v522 = vunpack.c.l.b16 %v378
        %v523 = vunpack.c.l.b16 %v379
        %v524 = vunpack.c.l.b16 %v380
        %v525 = vunpack.c.l.b16 %v381
        %v526 = vunpack.c.l.b16 %v382
        %v527 = vunpack.c.l.b16 %v383
        %v528 = vunpack.c.l.b16 %v384
        %v529 = vpack.c.b16 %v498, %v497
        %v530 = vpack.c.b16 %v500, %v499
        %v531 = vpack.c.b16 %v502, %v501
        %v532 = vpack.c.b16 %v504, %v503
        %v533 = vpack.c.b16 %v506, %v505
        %v534 = vpack.c.b16 %v508, %v507
        %v535 = vpack.c.b16 %v510, %v509
        %v536 = vpack.c.b16 %v512, %v511
        %v537 = vpack.c.b16 %v514, %v513
        %v538 = vpack.c.b16 %v516, %v515
        %v539 = vpack.c.b16 %v518, %v517
        %v540 = vpack.c.b16 %v520, %v519
        %v541 = vpack.c.b16 %v522, %v521
        %v542 = vpack.c.b16 %v524, %v523
        %v543 = vpack.c.b16 %v526, %v525
        %v544 = vpack.c.b16 %v528, %v527
        %561 = vmatprep.subr.bf16.mxu0 0
        %562 = vmatpush1.bf16.msra.mxu0 %v529
        %563 = vmatprep.subr.bf16.mxu0 0
        %564 = vmatpush1.bf16.msra.mxu0 %v530
        %565 = vmatprep.subr.bf16.mxu0 0
        %566 = vmatpush1.bf16.msra.mxu0 %v531
        %567 = vmatprep.subr.bf16.mxu0 0
        %568 = vmatpush1.bf16.msra.mxu0 %v532
        %569 = vmatprep.subr.bf16.mxu0 0
        %570 = vmatpush1.bf16.msra.mxu0 %v533
        %571 = vmatprep.subr.bf16.mxu0 0
        %572 = vmatpush1.bf16.msra.mxu0 %v534
        %573 = vmatprep.subr.bf16.mxu0 0
        %574 = vmatpush1.bf16.msra.mxu0 %v535
        %575 = vmatprep.subr.bf16.mxu0 0
        %576 = vmatpush1.bf16.msra.mxu0 %v536
        %577 = vmatprep.subr.bf16.mxu0 0
        %578 = vmatpush1.bf16.msra.mxu0 %v537
        %579 = vmatprep.subr.bf16.mxu0 0
        %580 = vmatpush1.bf16.msra.mxu0 %v538
        %581 = vmatprep.subr.bf16.mxu0 0
        %582 = vmatpush1.bf16.msra.mxu0 %v539
        %583 = vmatprep.subr.bf16.mxu0 0
        %584 = vmatpush1.bf16.msra.mxu0 %v540
        %585 = vmatprep.subr.bf16.mxu0 0
        %586 = vmatpush1.bf16.msra.mxu0 %v541
        %587 = vmatprep.subr.bf16.mxu0 0
        %588 = vmatpush1.bf16.msra.mxu0 %v542
        %589 = vmatprep.subr.bf16.mxu0 0
        %590 = vmatpush1.bf16.msra.mxu0 %v543
        %591 = vmatprep.subr.bf16.mxu0 0
        %592 = vmatpush1.bf16.msra.mxu0 %v544
        %593 = vmatprep.mubr.bf16.mxu0 %v434
        %594 = vmatmul.mubr.bf16.gmra.mrb[0].mxu0 %v433
        %v595 = vpop.f32.mrb[0].mxu0
        %v596 = vadd.f32 0.0, %v595
        %v597 = vpop.f32.mrb[0].mxu0
        %v598 = vpop.f32.mrb[0].mxu0
        %v599 = vadd.f32 0.0, %v598
        %v600 = vpop.f32.mrb[0].mxu0
        %601 = vmatprep.mubr.bf16.mxu0 %v436
        %602 = vmatmul.mubr.bf16.gmra.mrb[0].mxu0 %v435
        %v603 = vpop.f32.mrb[0].mxu0
        %v604 = vadd.f32 0.0, %v603
        %v605 = vpop.f32.mrb[0].mxu0
        %v606 = vpop.f32.mrb[0].mxu0
        %v607 = vadd.f32 0.0, %v606
        %v608 = vpop.f32.mrb[0].mxu0
        %609 = vmatprep.mubr.bf16.mxu0 %v438
        %610 = vmatmul.mubr.bf16.gmra.mrb[0].mxu0 %v437
        %v611 = vpop.f32.mrb[0].mxu0
        %v612 = vadd.f32 0.0, %v611
        %v613 = vpop.f32.mrb[0].mxu0
        %v614 = vpop.f32.mrb[0].mxu0
        %v615 = vadd.f32 0.0, %v614
        %v616 = vpop.f32.mrb[0].mxu0
        %617 = vmatprep.mubr.bf16.mxu0 %v440
        %618 = vmatmul.mubr.bf16.gmra.mrb[0].mxu0 %v439
        %v619 = vpop.f32.mrb[0].mxu0
        %v620 = vadd.f32 0.0, %v619
        %v621 = vpop.f32.mrb[0].mxu0
        %v622 = vpop.f32.mrb[0].mxu0
        %v623 = vadd.f32 0.0, %v622
        %v624 = vpop.f32.mrb[0].mxu0
        %625 = vmatprep.mubr.bf16.mxu0 %v442
        %626 = vmatmul.mubr.bf16.gmra.mrb[0].mxu0 %v441
        %v627 = vpop.f32.mrb[0].mxu0
        %v628 = vadd.f32 0.0, %v627
        %v629 = vpop.f32.mrb[0].mxu0
        %v630 = vpop.f32.mrb[0].mxu0
        %v631 = vadd.f32 0.0, %v630
        %v632 = vpop.f32.mrb[0].mxu0
        %633 = vmatprep.mubr.bf16.mxu0 %v444
        %634 = vmatmul.mubr.bf16.gmra.mrb[0].mxu0 %v443
        %v635 = vpop.f32.mrb[0].mxu0
        %v636 = vadd.f32 0.0, %v635
        %v637 = vpop.f32.mrb[0].mxu0
        %v638 = vpop.f32.mrb[0].mxu0
        %v639 = vadd.f32 0.0, %v638
        %v640 = vpop.f32.mrb[0].mxu0
        %641 = vmatprep.mubr.bf16.mxu0 %v446
        %642 = vmatmul.mubr.bf16.gmra.mrb[0].mxu0 %v445
        %v643 = vpop.f32.mrb[0].mxu0
        %v644 = vadd.f32 0.0, %v643
        %v645 = vpop.f32.mrb[0].mxu0
        %v646 = vpop.f32.mrb[0].mxu0
        %v647 = vadd.f32 0.0, %v646
        %v648 = vpop.f32.mrb[0].mxu0
        %649 = vmatprep.mubr.bf16.mxu0 %v448
        %650 = vmatmul.mubr.bf16.gmra.mrb[0].mxu0 %v447
        %v651 = vpop.f32.mrb[0].mxu0
        %v652 = vadd.f32 0.0, %v651
        %v653 = vpop.f32.mrb[0].mxu0
        %v654 = vpop.f32.mrb[0].mxu0
        %v655 = vadd.f32 0.0, %v654
        %v656 = vpop.f32.mrb[0].mxu0
        %657 = vdwg.mxu0
        %v658 = vadd.f32 %v321, %v596
        %v659 = vadd.f32 %v322, %v599
        %v660 = vadd.f32 %v323, %v604
        %v661 = vadd.f32 %v324, %v607
        %v662 = vadd.f32 %v325, %v612
        %v663 = vadd.f32 %v326, %v615
        %v664 = vadd.f32 %v327, %v620
        %v665 = vadd.f32 %v328, %v623
        %v666 = vadd.f32 %v329, %v628
        %v667 = vadd.f32 %v330, %v631
        %v668 = vadd.f32 %v331, %v636
        %v669 = vadd.f32 %v332, %v639
        %v670 = vadd.f32 %v333, %v644
        %v671 = vadd.f32 %v334, %v647
        %v672 = vadd.f32 %v335, %v652
        %v673 = vadd.f32 %v336, %v655
        %674 = vst [vmem:[#allocation2] sm:$0xff] %v658
        %675 = vst [vmem:[#allocation2 + $0x8] sm:$0xff] %v659
        %676 = vst [vmem:[#allocation2 + $0x10] sm:$0xff] %v660
        %677 = vst [vmem:[#allocation2 + $0x18] sm:$0xff] %v661
        %678 = vst [vmem:[#allocation2 + $0x20] sm:$0xff] %v662
        %679 = vst [vmem:[#allocation2 + $0x28] sm:$0xff] %v663
        %680 = vst [vmem:[#allocation2 + $0x30] sm:$0xff] %v664
        %681 = vst [vmem:[#allocation2 + $0x38] sm:$0xff] %v665
        %682 = vst [vmem:[#allocation2 + $0x40] sm:$0xff] %v666
        %683 = vst [vmem:[#allocation2 + $0x48] sm:$0xff] %v667
        %684 = vst [vmem:[#allocation2 + $0x50] sm:$0xff] %v668
        %685 = vst [vmem:[#allocation2 + $0x58] sm:$0xff] %v669
        %686 = vst [vmem:[#allocation2 + $0x60] sm:$0xff] %v670
        %687 = vst [vmem:[#allocation2 + $0x68] sm:$0xff] %v671
        %688 = vst [vmem:[#allocation2 + $0x70] sm:$0xff] %v672
        %689 = vst [vmem:[#allocation2 + $0x78] sm:$0xff] %v673
        // Predicated region
        $region49: #{tpu_custom_call.1} parent=35 // pred_check
          %p690 = pneg %p301
        $region50: #{tpu_custom_call.1} parent=35 // pred_check_branch
          %692 = sbr.rel (%p690) target = $region52
        $region51: #{tpu_custom_call.1} parent=35 // pred_region
          %v693 = vld [vmem:[#allocation2] sm:$0xff]
          %v694 = vld [vmem:[#allocation2 + $0x8] sm:$0xff]
          %v695 = vld [vmem:[#allocation2 + $0x10] sm:$0xff]
          %v696 = vld [vmem:[#allocation2 + $0x18] sm:$0xff]
          %v697 = vld [vmem:[#allocation2 + $0x20] sm:$0xff]
          %v698 = vld [vmem:[#allocation2 + $0x28] sm:$0xff]
          %v699 = vld [vmem:[#allocation2 + $0x30] sm:$0xff]
          %v700 = vld [vmem:[#allocation2 + $0x38] sm:$0xff]
          %v701 = vld [vmem:[#allocation2 + $0x40] sm:$0xff]
          %v702 = vld [vmem:[#allocation2 + $0x48] sm:$0xff]
          %v703 = vld [vmem:[#allocation2 + $0x50] sm:$0xff]
          %v704 = vld [vmem:[#allocation2 + $0x58] sm:$0xff]
          %v705 = vld [vmem:[#allocation2 + $0x60] sm:$0xff]
          %v706 = vld [vmem:[#allocation2 + $0x68] sm:$0xff]
          %v707 = vld [vmem:[#allocation2 + $0x70] sm:$0xff]
          %v708 = vld [vmem:[#allocation2 + $0x78] sm:$0xff]
          %v709 = vld [vmem:[%s295] sm:$0x1]
          %v711 = vlaneseq
          %v712 = vshrl.u32 %v711, 7
          %v713 = vsub.s32 0, %v712
          %v714 = vrot.slane %v709, %v713
          %v716 = vmul.f32 %v693, %v714
          %v717 = vmul.f32 %v694, %v714
          %v718 = vmul.f32 %v695, %v714
          %v719 = vmul.f32 %v696, %v714
          %v720 = vmul.f32 %v697, %v714
          %v721 = vmul.f32 %v698, %v714
          %v722 = vmul.f32 %v699, %v714
          %v723 = vmul.f32 %v700, %v714
          %v724 = vmul.f32 %v701, %v714
          %v725 = vmul.f32 %v702, %v714
          %v726 = vmul.f32 %v703, %v714
          %v727 = vmul.f32 %v704, %v714
          %v728 = vmul.f32 %v705, %v714
          %v729 = vmul.f32 %v706, %v714
          %v730 = vmul.f32 %v707, %v714
          %v731 = vmul.f32 %v708, %v714
          %v732 = vld [vmem:[%s298] sm:$0x1]
          %v734 = vlaneseq
          %v735 = vshrl.u32 %v734, 7
          %v736 = vsub.s32 0, %v735
          %v737 = vrot.slane %v732, %v736
          %v739 = vadd.f32 %v716, %v737
          %v740 = vadd.f32 %v717, %v737
          %v741 = vadd.f32 %v718, %v737
          %v742 = vadd.f32 %v719, %v737
          %v743 = vadd.f32 %v720, %v737
          %v744 = vadd.f32 %v721, %v737
          %v745 = vadd.f32 %v722, %v737
          %v746 = vadd.f32 %v723, %v737
          %v747 = vadd.f32 %v724, %v737
          %v748 = vadd.f32 %v725, %v737
          %v749 = vadd.f32 %v726, %v737
          %v750 = vadd.f32 %v727, %v737
          %v751 = vadd.f32 %v728, %v737
          %v752 = vadd.f32 %v729, %v737
          %v753 = vadd.f32 %v730, %v737
          %v754 = vadd.f32 %v731, %v737
          %vm755 = vcmp.gt.f32.partialorder %v739, 0.0
          %vm756 = vcmp.gt.f32.partialorder %v740, 0.0
          %vm757 = vcmp.gt.f32.partialorder %v741, 0.0
          %vm758 = vcmp.gt.f32.partialorder %v742, 0.0
          %vm759 = vcmp.gt.f32.partialorder %v743, 0.0
          %vm760 = vcmp.gt.f32.partialorder %v744, 0.0
          %vm761 = vcmp.gt.f32.partialorder %v745, 0.0
          %vm762 = vcmp.gt.f32.partialorder %v746, 0.0
          %vm763 = vcmp.gt.f32.partialorder %v747, 0.0
          %vm764 = vcmp.gt.f32.partialorder %v748, 0.0
          %vm765 = vcmp.gt.f32.partialorder %v749, 0.0
          %vm766 = vcmp.gt.f32.partialorder %v750, 0.0
          %vm767 = vcmp.gt.f32.partialorder %v751, 0.0
          %vm768 = vcmp.gt.f32.partialorder %v752, 0.0
          %vm769 = vcmp.gt.f32.partialorder %v753, 0.0
          %vm770 = vcmp.gt.f32.partialorder %v754, 0.0
          %v771 = vmul.f32 %v739, 0.1
          %v772 = vmul.f32 %v740, 0.1
          %v773 = vmul.f32 %v741, 0.1
          %v774 = vmul.f32 %v742, 0.1
          %v775 = vmul.f32 %v743, 0.1
          %v776 = vmul.f32 %v744, 0.1
          %v777 = vmul.f32 %v745, 0.1
          %v778 = vmul.f32 %v746, 0.1
          %v779 = vmul.f32 %v747, 0.1
          %v780 = vmul.f32 %v748, 0.1
          %v781 = vmul.f32 %v749, 0.1
          %v782 = vmul.f32 %v750, 0.1
          %v783 = vmul.f32 %v751, 0.1
          %v784 = vmul.f32 %v752, 0.1
          %v785 = vmul.f32 %v753, 0.1
          %v786 = vmul.f32 %v754, 0.1
          %v787 = vsel %vm755, %v739, %v771
          %v788 = vsel %vm756, %v740, %v772
          %v789 = vsel %vm757, %v741, %v773
          %v790 = vsel %vm758, %v742, %v774
          %v791 = vsel %vm759, %v743, %v775
          %v792 = vsel %vm760, %v744, %v776
          %v793 = vsel %vm761, %v745, %v777
          %v794 = vsel %vm762, %v746, %v778
          %v795 = vsel %vm763, %v747, %v779
          %v796 = vsel %vm764, %v748, %v780
          %v797 = vsel %vm765, %v749, %v781
          %v798 = vsel %vm766, %v750, %v782
          %v799 = vsel %vm767, %v751, %v783
          %v800 = vsel %vm768, %v752, %v784
          %v801 = vsel %vm769, %v753, %v785
          %v802 = vsel %vm770, %v754, %v786
          %803 = vst [vmem:[%s289] sm:$0xff] %v787
          %804 = vst [vmem:[%s289 + $0x8] sm:$0xff] %v788
          %805 = vst [vmem:[%s289 + $0x10] sm:$0xff] %v789
          %806 = vst [vmem:[%s289 + $0x18] sm:$0xff] %v790
          %807 = vst [vmem:[%s289 + $0x20] sm:$0xff] %v791
          %808 = vst [vmem:[%s289 + $0x28] sm:$0xff] %v792
          %809 = vst [vmem:[%s289 + $0x30] sm:$0xff] %v793
          %810 = vst [vmem:[%s289 + $0x38] sm:$0xff] %v794
          %811 = vst [vmem:[%s289 + $0x40] sm:$0xff] %v795
          %812 = vst [vmem:[%s289 + $0x48] sm:$0xff] %v796
          %813 = vst [vmem:[%s289 + $0x50] sm:$0xff] %v797
          %814 = vst [vmem:[%s289 + $0x58] sm:$0xff] %v798
          %815 = vst [vmem:[%s289 + $0x60] sm:$0xff] %v799
          %816 = vst [vmem:[%s289 + $0x68] sm:$0xff] %v800
          %817 = vst [vmem:[%s289 + $0x70] sm:$0xff] %v801
          %818 = vst [vmem:[%s289 + $0x78] sm:$0xff] %v802
        $region52: #{tpu_custom_call.1} parent=35 // pred_fallthru
          _
        %s819 = sand.u32 %s159, 1
        %s820 = scalar_lea.sflag [#allocation5], %s819
        %s821 = sand.u32 %s159, 1
        %s822 = smul.addr %s821, 128
        %s823 = scalar_lea.vmem [#allocation8], %s822
        // Predicated region
        $region53: #{tpu_custom_call.1} parent=35 // pred_check
          %p824 = pneg %p169
        $region54: #{tpu_custom_call.1} parent=35 // pred_check_branch
          %826 = sbr.rel (%p824) target = $region56
        $region55: #{tpu_custom_call.1} parent=35 // pred_region
          %s827 = smul.u32 16, %s27
          %s829 = ssub.s32 2048, 2048
          %830 = vsyncadd %s820, %s829
          %s831 = sadd.s32 %s28, %s827
          %s832 = smul.addr %s831, 128
          %s833 = scalar_lea.hbm %s4, %s832
          %s834 = sshll.u32 %s823, 4
          %s835 = int_to_ptr.vmem [resolvable:$true] %s834
          %840 = dma.vmem_to_hbm [thread:$0]  %s835, 2048, %s833, %s820, 128, 128, 8
        $region56: #{tpu_custom_call.1} parent=35 // pred_fallthru
          _
      $region36: #{tpu_custom_call.1} parent=5 // pred_fallthru
        _
      %p841 = scmp.le.s32.totalorder 2, %s17
      // Predicated region
      $region57: #{tpu_custom_call.1} parent=5 // pred_check
        %p842 = pneg %p841
      $region58: #{tpu_custom_call.1} parent=5 // pred_check_branch
        %844 = sbr.rel (%p842) target = $region60
      $region59: #{tpu_custom_call.1} parent=5 // pred_region
        %s845 = ssub.s32 %s17, 2
        // Predicated region
        $region61: #{tpu_custom_call.1} parent=59 // pred_check
          %p846 = pneg %p175
        $region62: #{tpu_custom_call.1} parent=59 // pred_check_branch
          %848 = sbr.rel (%p846) target = $region64
        $region63: #{tpu_custom_call.1} parent=59 // pred_region
          %s849 = sand.u32 %s160, 1
          %s850 = scalar_lea.sflag [#allocation5], %s849
          %s851 = sand.u32 %s160, 1
          %s852 = smul.addr %s851, 128
          %s853 = scalar_lea.vmem [#allocation8], %s852
          %854 = dma.done %s850, 2048
        $region64: #{tpu_custom_call.1} parent=59 // pred_fallthru
          _
      $region60: #{tpu_custom_call.1} parent=5 // pred_fallthru
        _
    $region6: #{tpu_custom_call.1} parent=1 // loop_footer
      %s21 = sadd.s32 1, %s17
    $region7: #{tpu_custom_call.1} parent=1 // loop_footer_branch
      %16 = sbr.rel target = $region3
    $region8: #{tpu_custom_call.1} parent=1 // loop_exit
      _
    %855 = vsyncpa [#allocation4], 1
    %s856 = scalar_lea.sflag [#allocation4], 1
    %857 = vsyncpa %s856, 1
    %858 = vsyncpa [#allocation7], 1
    %859 = vsyncpa [#allocation5], 1
    %s860 = scalar_lea.sflag [#allocation5], 1
    %861 = vsyncpa %s860, 1

</llo_original>
